<compile_context>
chip_gen: v7x
topology: tpu7x:2x2x1
jax: 0.10.0
libtpu: 0.0.40
codegen_flags: <defaults>
</compile_context>

<pallas_src>
import functools

import jax
import jax.numpy as jnp
from jax.experimental import pallas as pl
from jax.experimental.pallas import tpu as pltpu

EPS = 1e-5
_VMEM_LIMIT_BYTES = 32 * 1024 * 1024     # raise v5e's 16 MiB scoped default; fine on v6e/v7x
_X_TILE_BUDGET_BYTES = 4 * 1024 * 1024   # per x tile => <= ~16 MiB double-buffered in+out


def _rms_kernel(x_ref, mean_ref, var_ref, o_ref, *, clamp, unnorm):
    # x tile in native dtype; compute in f32 (v5e VPU has no bf16 ALU anyway).
    x = x_ref[...].astype(jnp.float32)        # (tile_n, tile_d)
    mean = mean_ref[...]                      # (1, tile_d) f32
    var = var_ref[...]                        # (1, tile_d) f32

    if unnorm:
        scale = jnp.sqrt(var + EPS)           # (1, tile_d)
        shift = mean
        if clamp:
            x = jnp.clip(x, -clamp, clamp)
        y = x * scale + shift
    else:
        scale = jax.lax.rsqrt(var + EPS)      # EUP rsqrt, (1, tile_d) only
        shift = -mean * scale
        y = x * scale + shift
        if clamp:
            y = jnp.clip(y, -clamp, clamp)

    o_ref[...] = y.astype(o_ref.dtype)


def _choose_tiles(n, d, itemsize):
    """Largest (rows, lanes) tile under the VMEM budget; lane tile multiple of 128."""
    # Lane (last) dim: big multiple of 128 keeps stores lane-dense; if D is not
    # 128-aligned, use full D (block == full dim is always legal).
    tile_d = min(d, 2048) if d % 128 == 0 else d

    rows_cap = _X_TILE_BUDGET_BYTES // max(1, tile_d * itemsize)
    rows_cap = max(8, (rows_cap // 8) * 8)

    x_bytes = n * d * itemsize
    if x_bytes <= (1 << 20) or n <= 16:
        # Tiny problem: one (or very few) blocks; grid-step overhead would dominate.
        tile_n = n if n <= rows_cap else rows_cap
    else:
        # Keep at least 2 row-steps so v7x's two TensorCores both get work.
        half_rows = max(8, (((n + 1) // 2) // 8) * 8)
        tile_n = min(rows_cap, half_rows)
    return tile_n, tile_d


def running_mean_std_forward(x, mean, var, *, clamp=0.0, unnorm=False,
                             tile_n=None, tile_d=None, donate_x=False):
    """x: (..., D) any float dtype; mean/var: (D,). Returns same shape/dtype as x."""
    orig_shape = x.shape
    d = orig_shape[-1]
    x2 = x.reshape(-1, d)                    # flatten leading dims (free)
    n = x2.shape[0]

    mean2 = mean.reshape(1, d).astype(jnp.float32)
    var2 = var.reshape(1, d).astype(jnp.float32)

    auto_tn, auto_td = _choose_tiles(n, d, x2.dtype.itemsize)
    tn = auto_tn if tile_n is None else tile_n
    td = auto_td if tile_d is None else tile_d

    grid = (pl.cdiv(n, tn), pl.cdiv(d, td))  # ragged edges handled by Pallas masking

    kernel = functools.partial(_rms_kernel, clamp=float(clamp), unnorm=bool(unnorm))

    out = pl.pallas_call(
        kernel,
        out_shape=jax.ShapeDtypeStruct((n, d), x2.dtype),
        grid_spec=pltpu.PrefetchScalarGridSpec(
            num_scalar_prefetch=0,
            grid=grid,
            in_specs=[
                pl.BlockSpec((tn, td), lambda i, j: (i, j)),   # x tile (native dtype)
                pl.BlockSpec((1, td), lambda i, j: (0, j)),    # mean (broadcast over rows)
                pl.BlockSpec((1, td), lambda i, j: (0, j)),    # var  (broadcast over rows)
            ],
            out_specs=pl.BlockSpec((tn, td), lambda i, j: (i, j)),
        ),
        compiler_params=pltpu.CompilerParams(
            dimension_semantics=("parallel", "parallel"),
            vmem_limit_bytes=_VMEM_LIMIT_BYTES,
        ),
        input_output_aliases={0: 0} if donate_x else {},
    )(x2, mean2, var2)

    return out.reshape(orig_shape)


def _ref_forward(x, mean, var, *, clamp=0.0, unnorm=False):
    x = x.astype(jnp.float32)
    mean = mean.astype(jnp.float32)
    var = var.astype(jnp.float32) + EPS
    if unnorm:
        if clamp:
            x = jnp.clip(x, -clamp, clamp)
        return mean + jnp.sqrt(var) * x
    y = (x - mean) * jax.lax.rsqrt(var)
    if clamp:
        y = jnp.clip(y, -clamp, clamp)
    return y


if __name__ == "__main__":
    key = jax.random.PRNGKey(0)
    k1, k2, k3, k4, k5 = jax.random.split(key, 5)

    # ---- case 1: small, ragged N (20 not divisible by 8), small D (32 < 128) ----
    N, D = 20, 32
    x = jax.random.normal(k1, (N, D), dtype=jnp.float32) * 3.0
    mean = jax.random.normal(k2, (D,), dtype=jnp.float32)
    var = jax.random.uniform(k3, (D,), dtype=jnp.float32, minval=0.5, maxval=2.0)

    y0 = jax.block_until_ready(running_mean_std_forward(x, mean, var, clamp=0.0, unnorm=False))
    y1 = jax.block_until_ready(running_mean_std_forward(x, mean, var, clamp=1.5, unnorm=False))
    y2 = jax.block_until_ready(running_mean_std_forward(x, mean, var, clamp=2.0, unnorm=True))
    assert jnp.allclose(y0, _ref_forward(x, mean, var, clamp=0.0, unnorm=False), atol=1e-4, rtol=1e-5)
    assert jnp.allclose(y1, _ref_forward(x, mean, var, clamp=1.5, unnorm=False), atol=1e-4, rtol=1e-5)
    assert jnp.allclose(y2, _ref_forward(x, mean, var, clamp=2.0, unnorm=True), atol=1e-4, rtol=1e-5)

    # ---- case 2: force a multi-step ragged 2-D grid (exercises edge masking) ----
    N2, D2 = 44, 384
    x2 = jax.random.normal(k4, (N2, D2), dtype=jnp.float32) * 2.0
    mean2 = jax.random.normal(k5, (D2,), dtype=jnp.float32)
    var2 = jax.random.uniform(k3, (D2,), dtype=jnp.float32, minval=0.25, maxval=4.0)
    y3 = jax.block_until_ready(
        running_mean_std_forward(x2, mean2, var2, clamp=3.0, unnorm=False, tile_n=8, tile_d=256))
    assert jnp.allclose(y3, _ref_forward(x2, mean2, var2, clamp=3.0, unnorm=False), atol=1e-4, rtol=1e-5)

    # ---- case 3: bf16 I/O (cast to f32 only inside the kernel), 3-D input shape ----
    x3 = (jax.random.normal(k1, (2, 5, D), dtype=jnp.float32) * 3.0).astype(jnp.bfloat16)
    y4 = jax.block_until_ready(running_mean_std_forward(x3, mean, var, clamp=0.0, unnorm=False))
    assert y4.dtype == jnp.bfloat16 and y4.shape == x3.shape
    ref4 = _ref_forward(x3, mean, var, clamp=0.0, unnorm=False)
    assert jnp.allclose(y4.astype(jnp.float32), ref4, atol=5e-2, rtol=5e-2)

    # TODO(synk): `update()` (Welford-style running-statistics merge) is a stateful
    # training-time op, not part of forward; left out of the kernel.
    print("KERNEL_OK")
</pallas_src>

<mosaic_0001>
module attributes {stable_mosaic.version = 11 : i64} {
  func.func @_rms_kernel(%arg0: i32, %arg1: i32, %arg2: memref<20x32xf32, #tpu.memory_space<vmem>>, %arg3: memref<1x32xf32, #tpu.memory_space<vmem>>, %arg4: memref<1x32xf32, #tpu.memory_space<vmem>>, %arg5: memref<20x32xf32, #tpu.memory_space<vmem>>) attributes {dimension_semantics = [#tpu.dimension_semantics<parallel>, #tpu.dimension_semantics<parallel>], iteration_bounds = array<i64: 1, 1>, scalar_prefetch = 0 : i64, scratch_operands = 0 : i64, tpu.core_type = #tpu.core_type<tc>, window_params = [{transform_indices = @transform_0, window_bounds = array<i64: 20, 32>}, {transform_indices = @transform_1, window_bounds = array<i64: 1, 32>}, {transform_indices = @transform_2, window_bounds = array<i64: 1, 32>}, {transform_indices = @transform_3, window_bounds = array<i64: 20, 32>}]} {
    %c0 = arith.constant 0 : index
    %c0_0 = arith.constant 0 : index
    %0 = vector.load %arg2[%c0, %c0_0] : memref<20x32xf32, #tpu.memory_space<vmem>>, vector<20x32xf32>
    %c0_1 = arith.constant 0 : index
    %c0_2 = arith.constant 0 : index
    %1 = vector.load %arg3[%c0_1, %c0_2] : memref<1x32xf32, #tpu.memory_space<vmem>>, vector<1x32xf32>
    %c0_3 = arith.constant 0 : index
    %c0_4 = arith.constant 0 : index
    %2 = vector.load %arg4[%c0_3, %c0_4] : memref<1x32xf32, #tpu.memory_space<vmem>>, vector<1x32xf32>
    %cst = arith.constant 9.99999974E-6 : f32
    %3 = vector.broadcast %cst : f32 to vector<1x32xf32>
    %4 = arith.addf %2, %3 : vector<1x32xf32>
    %5 = math.rsqrt %4 : vector<1x32xf32>
    %cst_5 = arith.constant 0.000000e+00 : f32
    %6 = vector.broadcast %cst_5 : f32 to vector<1x32xf32>
    %7 = arith.subf %6, %1 : vector<1x32xf32>
    %8 = arith.mulf %7, %5 : vector<1x32xf32>
    %9 = vector.broadcast %5 : vector<1x32xf32> to vector<20x32xf32>
    %10 = arith.mulf %0, %9 : vector<20x32xf32>
    %11 = vector.broadcast %8 : vector<1x32xf32> to vector<20x32xf32>
    %12 = arith.addf %10, %11 : vector<20x32xf32>
    %c0_6 = arith.constant 0 : index
    %c0_7 = arith.constant 0 : index
    %13 = vector.load %arg5[%c0_6, %c0_7] : memref<20x32xf32, #tpu.memory_space<vmem>>, vector<20x32xf32>
    tpu.vector_store %arg5[%c0_6, %c0_7], %12 {strides = array<i32>} : memref<20x32xf32, #tpu.memory_space<vmem>>, vector<20x32xf32>,
    return
  }
  func.func @transform_0(%arg0: i32, %arg1: i32) -> (i32, i32) {
    %c0_i32 = arith.constant 0 : i32
    return %arg0, %arg1 : i32, i32
  }
  func.func @transform_1(%arg0: i32, %arg1: i32) -> (i32, i32) {
    %c0_i32 = arith.constant 0 : i32
    %c0_i32_0 = arith.constant 0 : i32
    return %c0_i32, %arg1 : i32, i32
  }
  func.func @transform_2(%arg0: i32, %arg1: i32) -> (i32, i32) {
    %c0_i32 = arith.constant 0 : i32
    %c0_i32_0 = arith.constant 0 : i32
    return %c0_i32, %arg1 : i32, i32
  }
  func.func @transform_3(%arg0: i32, %arg1: i32) -> (i32, i32) {
    %c0_i32 = arith.constant 0 : i32
    return %arg0, %arg1 : i32, i32
  }
}

</mosaic_0001>

<llo_original>
// kernel: tpu_custom_call.1
$region0: #{tpu_custom_call.1}
  #allocation0 [shape = 'u32[]', space=smem, size = 0x4, offset = 0x4, fixed_abs, tag = 'smem constant byte address 0x4 - core index']
  #allocation1 [shape = 'u32[144,128]{1,0:T(1,128)}', space=vmem, size = 0x12000, scoped, tag = 'internal scratch']
  %s0 = inlined_call_operand.hbm [shape: f32[20,32], index: 0, kind: input, shape index: {}]
  %s1 = inlined_call_operand.vmem [shape: f32[1,32], index: 1, kind: input, shape index: {}]
  %s2 = inlined_call_operand.vmem [shape: f32[1,32], index: 2, kind: input, shape index: {}]
  %s3 = inlined_call_operand.hbm [shape: f32[20,32], index: 3, kind: output, shape index: {}]
  %s4 = sld [smem:[#allocation0]]
  $region26: #{tpu_custom_call.1} parent=0
    _
  %s6 = ssub.s32 1, %s4
  %s7 = scalar_select 0, %s6, %s4
  $region1: #{tpu_custom_call.1} parent=0
    #allocation2 [shape = 'u8[12288]{0}', space=vmem, size = 0x3000, scoped, tag = 'input window, operand 0, single buffered']
    #allocation3 [shape = 's32[1]{0}', space=sflag, size = 0x4, scoped, tag = 'scoped memory for tpu_custom_call.1']
    #allocation4 [shape = 's32[1]{0}', space=sflag, size = 0x4, scoped, tag = 'scoped memory for tpu_custom_call.1']
    #allocation5 [shape = 'u8[12288]{0}', space=vmem, size = 0x3000, scoped, tag = 'output window, operand 0, single buffered']
    %8 = vsyncpa [#allocation3], 0
    %9 = vsyncpa [#allocation4], 0
    // Predicated region
    $region2: #{tpu_custom_call.1} parent=1 // pred_check
      _
    $region3: #{tpu_custom_call.1} parent=1 // pred_check_branch
      %11 = sbr.rel (0) target = $region5
    $region4: #{tpu_custom_call.1} parent=1 // pred_region
      %s13 = ssub.s32 384, 384
      %14 = vsyncadd [#allocation3], %s13
      %s15 = sshll.u32 [#allocation2], 4
      %s16 = int_to_ptr.vmem [resolvable:$true] %s15
      %21 = dma.hbm_to_vmem [thread:$0]  %s0, 384, %s16, [#allocation3], 128, 128, 8
    $region5: #{tpu_custom_call.1} parent=1 // pred_fallthru
      _
    // Predicated region
    $region6: #{tpu_custom_call.1} parent=1 // pred_check
      _
    $region7: #{tpu_custom_call.1} parent=1 // pred_check_branch
      %23 = sbr.rel (0) target = $region9
    $region8: #{tpu_custom_call.1} parent=1 // pred_region
      _
    $region9: #{tpu_custom_call.1} parent=1 // pred_fallthru
      _
    // Predicated region
    $region10: #{tpu_custom_call.1} parent=1 // pred_check
      _
    $region11: #{tpu_custom_call.1} parent=1 // pred_check_branch
      %25 = sbr.rel (0) target = $region13
    $region12: #{tpu_custom_call.1} parent=1 // pred_region
      _
    $region13: #{tpu_custom_call.1} parent=1 // pred_fallthru
      _
    // Predicated region
    $region14: #{tpu_custom_call.1} parent=1 // pred_check
      _
    $region15: #{tpu_custom_call.1} parent=1 // pred_check_branch
      %27 = sbr.rel (0) target = $region17
    $region16: #{tpu_custom_call.1} parent=1 // pred_region
      %28 = dma.done [#allocation3], 384
    $region17: #{tpu_custom_call.1} parent=1 // pred_fallthru
      _
    %v29 = vld [vmem:[#allocation2] sm:$0xff]
    %v30 = vld [vmem:[#allocation2 + $0x8] sm:$0xff]
    %v31 = vld [vmem:[#allocation2 + $0x10] sm:$0xf]
    %v32 = vld [vmem:[%s1] sm:$0x1]
    %v33 = vld [vmem:[%s2] sm:$0x1]
    %v34 = vadd.f32 %v33, 1e-05
    %v35 = vrsqrt.pop %v34
    %v36 = vsub.f32 0.0, %v32
    %v37 = vmul.f32 %v36, %v35
    %v39 = vlaneseq
    %v40 = vshrl.u32 %v39, 7
    %v41 = vsub.s32 0, %v40
    %v42 = vrot.slane %v35, %v41
    %v44 = vmul.f32 %v29, %v42
    %v45 = vmul.f32 %v30, %v42
    %v46 = vmul.f32 %v31, %v42
    %v48 = vlaneseq
    %v49 = vshrl.u32 %v48, 7
    %v50 = vsub.s32 0, %v49
    %v51 = vrot.slane %v37, %v50
    %v53 = vadd.f32 %v44, %v51
    %v54 = vadd.f32 %v45, %v51
    %v55 = vadd.f32 %v46, %v51
    %vm56 = vcmask 261120
    %57 = vst.msk [vmem:[#allocation5] sm:$0xff] %vm56, %v53
    %58 = vst.msk [vmem:[#allocation5 + $0x8] sm:$0xff] %vm56, %v54
    %vm59 = vcmask 257024
    %60 = vst.msk [vmem:[#allocation5 + $0x10] sm:$0xf] %vm59, %v55
    // Predicated region
    $region18: #{tpu_custom_call.1} parent=1 // pred_check
      _
    $region19: #{tpu_custom_call.1} parent=1 // pred_check_branch
      %62 = sbr.rel (0) target = $region21
    $region20: #{tpu_custom_call.1} parent=1 // pred_region
      %s64 = ssub.s32 384, 384
      %65 = vsyncadd [#allocation4], %s64
      %s66 = sshll.u32 [#allocation5], 4
      %s67 = int_to_ptr.vmem [resolvable:$true] %s66
      %72 = dma.vmem_to_hbm [thread:$0]  %s67, 384, %s3, [#allocation4], 128, 128, 8
    $region21: #{tpu_custom_call.1} parent=1 // pred_fallthru
      _
    // Predicated region
    $region22: #{tpu_custom_call.1} parent=1 // pred_check
      _
    $region23: #{tpu_custom_call.1} parent=1 // pred_check_branch
      %74 = sbr.rel (0) target = $region25
    $region24: #{tpu_custom_call.1} parent=1 // pred_region
      %75 = dma.done [#allocation4], 384
    $region25: #{tpu_custom_call.1} parent=1 // pred_fallthru
      _
    %76 = vsyncpa [#allocation3], 1
    %77 = vsyncpa [#allocation4], 1

</llo_original>
